<compile_context>
chip_gen: v7x
topology: tpu7x:2x2x1
jax: 0.10.0
libtpu: 0.0.40
codegen_flags: <defaults>
</compile_context>

<pallas_src>
import jax
import jax.numpy as jnp
from jax.experimental import pallas as pl
from jax.experimental.pallas import tpu as pltpu


# --------------------------------------------------------------------------- #
# Kernels
# --------------------------------------------------------------------------- #
def _unit_kernel_fused(x_ref, w_ref, b_ref, o_ref):
    # Single-K-step path: one MXU dot, fused f32 bias + tanh epilogue,
    # no accumulator scratch, no pl.when branches.
    y = jnp.dot(x_ref[...], w_ref[...], preferred_element_type=jnp.float32)
    o_ref[...] = jnp.tanh(y + b_ref[...]).astype(o_ref.dtype)


def _unit_kernel_ktiled(x_ref, w_ref, b_ref, o_ref, acc_ref):
    # Tiled-K path (only used for in_N > 2048).
    k = pl.program_id(2)
    part = jnp.dot(x_ref[...], w_ref[...], preferred_element_type=jnp.float32)

    @pl.when(k == 0)
    def _():
        acc_ref[...] = part          # assign on first step (no zero-init + +=)

    @pl.when(k != 0)
    def _():
        acc_ref[...] += part

    @pl.when(k == pl.num_programs(2) - 1)
    def _():
        o_ref[...] = jnp.tanh(acc_ref[...] + b_ref[...]).astype(o_ref.dtype)


# --------------------------------------------------------------------------- #
# Planning helpers
# --------------------------------------------------------------------------- #
def _cdiv(a, b):
    return -(-a // b)


def _round_up(x, m):
    return _cdiv(x, m) * m


def _pick_tile(dim, cap=1024):
    """dim is lane-aligned (or a full small dim); pick a tile <= cap dividing it."""
    if dim <= cap:
        return dim
    for t in (1024, 512, 256, 128):
        if t <= cap and dim % t == 0:
            return t
    return 128


_K_COLLAPSE_MAX = 2048   # collapse the K grid axis when in_N fits one tile


def _feature_plan(in_N, out_N):
    # K (contraction): no padding / no K tiling for in_N that fits one tile.
    if in_N <= _K_COLLAPSE_MAX:
        in_pad, tk = in_N, in_N
    else:
        in_pad = _round_up(in_N, 256)          # 256-aligned for 256x256 MXUs
        tk = _pick_tile(in_pad)
    # N (output features): lane-dense padding only when it actually helps.
    if out_N <= 128 or out_N % 128 == 0:
        out_pad = out_N                        # full-dim block allowed
    else:
        out_pad = _round_up(out_N, 256)
    tn = _pick_tile(out_pad)
    return in_pad, out_pad, tk, tn


def _batch_plan(B, n_parallel_tiles, cap):
    num = max(1, _cdiv(B, cap))
    # Make sure the parallel grid has >= 2 steps for v7x megacore when the
    # batch is big enough to be worth splitting.
    if num * n_parallel_tiles == 1 and B >= 16:
        num = 2
    tile_b = _round_up(_cdiv(B, num), 8)
    b_tiles = _cdiv(B, tile_b)                 # partial last block: OOB rows discarded
    return tile_b, b_tiles


# --------------------------------------------------------------------------- #
# Parameter prep (one-time; hoist out of the per-call path)
# --------------------------------------------------------------------------- #
def prepare_unit_params(weight, bias, *, compute_dtype=jnp.bfloat16):
    """weight: (out_N, in_N) native PyTorch layout; bias: (out_N,).

    Returns W^T padded to (in_pad, out_pad) in compute_dtype (so the kernel's
    contraction needs no per-tile transpose) and bias as (1, out_pad) f32.
    """
    out_N, in_N = weight.shape
    in_pad, out_pad, _, _ = _feature_plan(in_N, out_N)

    w_t = weight.T                                       # (in_N, out_N)
    if (in_pad, out_pad) != (in_N, out_N):
        w_t = jnp.pad(w_t, ((0, in_pad - in_N), (0, out_pad - out_N)))
    if compute_dtype is not None:
        w_t = w_t.astype(compute_dtype)

    b2d = bias.reshape(1, out_N).astype(jnp.float32)
    if out_pad != out_N:
        b2d = jnp.pad(b2d, ((0, 0), (0, out_pad - out_N)))
    return w_t, b2d


# --------------------------------------------------------------------------- #
# Forward
# --------------------------------------------------------------------------- #
def _unit_call(x, w_t, b2d, in_N, out_N, *, compute_dtype):
    B = x.shape[0]
    out_dtype = x.dtype
    in_pad, out_pad, tk, tn = _feature_plan(in_N, out_N)
    assert w_t.shape == (in_pad, out_pad) and b2d.shape == (1, out_pad)

    xp = x
    if in_pad != in_N:                       # only for in_N > _K_COLLAPSE_MAX
        xp = jnp.pad(x, ((0, 0), (0, in_pad - in_N)))
    if compute_dtype is not None:
        xp = xp.astype(compute_dtype)

    n_tiles = out_pad // tn
    k_tiles = in_pad // tk
    batch_cap = 1024 if jnp.dtype(xp.dtype).itemsize <= 2 else 512
    tile_b, b_tiles = _batch_plan(B, n_tiles, batch_cap)

    # Explicit VMEM budget: double-buffered x / W / bias / out (+ f32 acc and a
    # third W buffer on the tiled-K path), capped at 48 MiB for v7x (64 MiB).
    isz = jnp.dtype(xp.dtype).itemsize
    osz = jnp.dtype(out_dtype).itemsize
    est = 2 * (tile_b * tk * isz + tk * tn * isz + tn * 4 + tile_b * tn * osz)
    if k_tiles > 1:
        est += tile_b * tn * 4 + tk * tn * isz
    vmem_limit = int(min(48 << 20, max(32 << 20, est + (4 << 20))))

    if k_tiles == 1:
        out = pl.pallas_call(
            _unit_kernel_fused,
            out_shape=jax.ShapeDtypeStruct((B, out_pad), out_dtype),
            grid_spec=pltpu.PrefetchScalarGridSpec(
                num_scalar_prefetch=0,
                grid=(b_tiles, n_tiles),
                in_specs=[
                    pl.BlockSpec((tile_b, tk), lambda i, j: (i, 0)),   # x
                    pl.BlockSpec((tk, tn), lambda i, j: (0, j)),       # W^T
                    pl.BlockSpec((1, tn), lambda i, j: (0, j)),        # bias
                ],
                out_specs=pl.BlockSpec((tile_b, tn), lambda i, j: (i, j)),
            ),
            compiler_params=pltpu.CompilerParams(
                dimension_semantics=("parallel", "parallel"),
                vmem_limit_bytes=vmem_limit),
        )(xp, w_t, b2d)
    else:
        out = pl.pallas_call(
            _unit_kernel_ktiled,
            out_shape=jax.ShapeDtypeStruct((B, out_pad), out_dtype),
            grid_spec=pltpu.PrefetchScalarGridSpec(
                num_scalar_prefetch=0,
                grid=(b_tiles, n_tiles, k_tiles),
                in_specs=[
                    pl.BlockSpec((tile_b, tk), lambda i, j, k: (i, k)),   # x
                    pl.BlockSpec((tk, tn), lambda i, j, k: (k, j),        # W^T
                                 pipeline_mode=pl.Buffered(3)),
                    pl.BlockSpec((1, tn), lambda i, j, k: (0, j)),        # bias
                ],
                out_specs=pl.BlockSpec((tile_b, tn), lambda i, j, k: (i, j)),
                scratch_shapes=[pltpu.VMEM((tile_b, tn), jnp.float32)],
            ),
            compiler_params=pltpu.CompilerParams(
                dimension_semantics=("parallel", "parallel", "arbitrary"),
                vmem_limit_bytes=vmem_limit),
        )(xp, w_t, b2d)

    if out_pad != out_N:
        out = out[:, :out_N]
    return out


def make_unit_forward(weight, bias, *, compute_dtype=jnp.bfloat16):
    """Prepare params once (transpose + pad + cast) and return a jitted x -> y."""
    out_N, in_N = weight.shape
    w_t, b2d = prepare_unit_params(weight, bias, compute_dtype=compute_dtype)

    @jax.jit
    def fwd(x):
        return _unit_call(x, w_t, b2d, in_N, out_N, compute_dtype=compute_dtype)

    return fwd


def unit_forward(x, weight, bias, *, compute_dtype=jnp.bfloat16):
    """One-shot convenience wrapper (param prep happens inside the call)."""
    out_N, in_N = weight.shape
    w_t, b2d = prepare_unit_params(weight, bias, compute_dtype=compute_dtype)
    return _unit_call(x, w_t, b2d, in_N, out_N, compute_dtype=compute_dtype)


def reference_forward(x, weight, bias):
    return jnp.tanh(x @ weight.T + bias)


# --------------------------------------------------------------------------- #
# Self-test
# --------------------------------------------------------------------------- #
if __name__ == "__main__":
    key = jax.random.PRNGKey(0)

    # Case 1: toy Unit(in_N=32, out_N=32), batch=8, f32 params/activations.
    kx, kw, kb, key = jax.random.split(key, 4)
    B, in_N, out_N = 8, 32, 32
    x = jax.random.normal(kx, (B, in_N), dtype=jnp.float32)
    bound = 1.0 / jnp.sqrt(jnp.float32(in_N))
    weight = jax.random.uniform(kw, (out_N, in_N), jnp.float32, -bound, bound)
    bias = jax.random.uniform(kb, (out_N,), jnp.float32, -bound, bound)
    ref = reference_forward(x, weight, bias)

    # bf16 operands (default) with hoisted param prep.
    fwd = make_unit_forward(weight, bias)
    out_bf16 = jax.block_until_ready(fwd(x))
    assert out_bf16.shape == (B, out_N)
    assert jnp.allclose(out_bf16, ref, atol=3e-2, rtol=3e-2), "bf16 mismatch (case 1)"

    # f32 operands, tight tolerance.
    out_f32 = jax.block_until_ready(
        unit_forward(x, weight, bias, compute_dtype=jnp.float32))
    assert jnp.allclose(out_f32, ref, atol=1e-5, rtol=1e-5), "f32 mismatch (case 1)"

    # Case 2: uneven shapes (partial batch blocks, small non-aligned features).
    kx2, kw2, kb2, key = jax.random.split(key, 4)
    B2, in_N2, out_N2 = 20, 40, 24
    x2 = jax.random.normal(kx2, (B2, in_N2), dtype=jnp.float32)
    bound2 = 1.0 / jnp.sqrt(jnp.float32(in_N2))
    weight2 = jax.random.uniform(kw2, (out_N2, in_N2), jnp.float32, -bound2, bound2)
    bias2 = jax.random.uniform(kb2, (out_N2,), jnp.float32, -bound2, bound2)
    ref2 = reference_forward(x2, weight2, bias2)

    out2_bf16 = jax.block_until_ready(unit_forward(x2, weight2, bias2))
    assert out2_bf16.shape == (B2, out_N2)
    assert jnp.allclose(out2_bf16, ref2, atol=3e-2, rtol=3e-2), "bf16 mismatch (case 2)"

    out2_f32 = jax.block_until_ready(
        unit_forward(x2, weight2, bias2, compute_dtype=jnp.float32))
    assert jnp.allclose(out2_f32, ref2, atol=1e-5, rtol=1e-5), "f32 mismatch (case 2)"

    print("KERNEL_OK")
</pallas_src>

<mosaic_0001>
module attributes {stable_mosaic.version = 11 : i64} {
  func.func @_unit_kernel_fused(%arg0: i32, %arg1: i32, %arg2: memref<8x32xbf16, #tpu.memory_space<vmem>>, %arg3: memref<32x32xbf16, #tpu.memory_space<vmem>>, %arg4: memref<1x32xf32, #tpu.memory_space<vmem>>, %arg5: memref<8x32xf32, #tpu.memory_space<vmem>>) attributes {dimension_semantics = [#tpu.dimension_semantics<parallel>, #tpu.dimension_semantics<parallel>], iteration_bounds = array<i64: 1, 1>, scalar_prefetch = 0 : i64, scratch_operands = 0 : i64, tpu.core_type = #tpu.core_type<tc>, window_params = [{transform_indices = @transform_0, window_bounds = array<i64: 8, 32>}, {transform_indices = @transform_1, window_bounds = array<i64: 32, 32>}, {transform_indices = @transform_2, window_bounds = array<i64: 1, 32>}, {transform_indices = @transform_3, window_bounds = array<i64: 8, 32>}]} {
    %c0 = arith.constant 0 : index
    %c0_0 = arith.constant 0 : index
    %0 = vector.load %arg2[%c0, %c0_0] : memref<8x32xbf16, #tpu.memory_space<vmem>>, vector<8x32xbf16>
    %c0_1 = arith.constant 0 : index
    %c0_2 = arith.constant 0 : index
    %1 = vector.load %arg3[%c0_1, %c0_2] : memref<32x32xbf16, #tpu.memory_space<vmem>>, vector<32x32xbf16>
    %cst = arith.constant dense<0.000000e+00> : vector<8x32xf32>
    %2 = tpu.matmul %0, %1, %cst {dimension_numbers = #tpu.dot_dimension_numbers<[1], [0], [0], [1], [0, 0, 1, 1], [], []>} : vector<8x32xbf16>, vector<32x32xbf16>, vector<8x32xf32> -> vector<8x32xf32>
    %c0_3 = arith.constant 0 : index
    %c0_4 = arith.constant 0 : index
    %3 = vector.load %arg4[%c0_3, %c0_4] : memref<1x32xf32, #tpu.memory_space<vmem>>, vector<1x32xf32>
    %4 = vector.broadcast %3 : vector<1x32xf32> to vector<8x32xf32>
    %5 = arith.addf %2, %4 : vector<8x32xf32>
    %6 = math.tanh %5 : vector<8x32xf32>
    %c0_5 = arith.constant 0 : index
    %c0_6 = arith.constant 0 : index
    %7 = vector.load %arg5[%c0_5, %c0_6] : memref<8x32xf32, #tpu.memory_space<vmem>>, vector<8x32xf32>
    tpu.vector_store %arg5[%c0_5, %c0_6], %6 {strides = array<i32>} : memref<8x32xf32, #tpu.memory_space<vmem>>, vector<8x32xf32>,
    return
  }
  func.func @transform_0(%arg0: i32, %arg1: i32) -> (i32, i32) {
    %c0_i32 = arith.constant 0 : i32
    %c0_i32_0 = arith.constant 0 : i32
    return %arg0, %c0_i32 : i32, i32
  }
  func.func @transform_1(%arg0: i32, %arg1: i32) -> (i32, i32) {
    %c0_i32 = arith.constant 0 : i32
    %c0_i32_0 = arith.constant 0 : i32
    return %c0_i32, %arg1 : i32, i32
  }
  func.func @transform_2(%arg0: i32, %arg1: i32) -> (i32, i32) {
    %c0_i32 = arith.constant 0 : i32
    %c0_i32_0 = arith.constant 0 : i32
    return %c0_i32, %arg1 : i32, i32
  }
  func.func @transform_3(%arg0: i32, %arg1: i32) -> (i32, i32) {
    %c0_i32 = arith.constant 0 : i32
    return %arg0, %arg1 : i32, i32
  }
}

</mosaic_0001>

<llo_original>
// kernel: fwd.1
$region0: #{fwd.1}
  #allocation0 [shape = 'u32[]', space=smem, size = 0x4, offset = 0x4, fixed_abs, tag = 'smem constant byte address 0x4 - core index']
  #allocation1 [shape = 'u32[144,128]{1,0:T(1,128)}', space=vmem, size = 0x12000, scoped, tag = 'internal scratch']
  %s0 = inlined_call_operand.vmem [shape: bf16[8,32], index: 0, kind: input, shape index: {}]
  %s1 = inlined_call_operand.vmem [shape: bf16[32,32], index: 1, kind: input, shape index: {}]
  %s2 = inlined_call_operand.vmem [shape: f32[1,32], index: 2, kind: input, shape index: {}]
  %s3 = inlined_call_operand.hbm [shape: f32[8,32], index: 3, kind: output, shape index: {}]
  %s4 = sld [smem:[#allocation0]]
  $region22: #{fwd.1} parent=0
    _
  %s6 = ssub.s32 1, %s4
  %s7 = scalar_select 0, %s6, %s4
  $region1: #{fwd.1} parent=0
    #allocation2 [shape = 'u8[4096]{0}', space=vmem, size = 0x1000, scoped, tag = 'output window, operand 0, single buffered']
    #allocation3 [shape = 's32[1]{0}', space=sflag, size = 0x4, scoped, tag = 'scoped memory for fwd.1']
    %8 = vsyncpa [#allocation3], 0
    // Predicated region
    $region2: #{fwd.1} parent=1 // pred_check
      _
    $region3: #{fwd.1} parent=1 // pred_check_branch
      %10 = sbr.rel (0) target = $region5
    $region4: #{fwd.1} parent=1 // pred_region
      _
    $region5: #{fwd.1} parent=1 // pred_fallthru
      _
    // Predicated region
    $region6: #{fwd.1} parent=1 // pred_check
      _
    $region7: #{fwd.1} parent=1 // pred_check_branch
      %12 = sbr.rel (0) target = $region9
    $region8: #{fwd.1} parent=1 // pred_region
      _
    $region9: #{fwd.1} parent=1 // pred_fallthru
      _
    // Predicated region
    $region10: #{fwd.1} parent=1 // pred_check
      _
    $region11: #{fwd.1} parent=1 // pred_check_branch
      %14 = sbr.rel (0) target = $region13
    $region12: #{fwd.1} parent=1 // pred_region
      _
    $region13: #{fwd.1} parent=1 // pred_fallthru
      _
    %v16 = vld [vmem:[%s0] sm:$0xf]
    %v17 = vld [vmem:[%s1] sm:$0xf]
    %v18 = vld [vmem:[%s1 + $0x4] sm:$0xf]
    %v19 = vld [vmem:[%s1 + $0x8] sm:$0xf]
    %v20 = vld [vmem:[%s1 + $0xc] sm:$0xf]
    %v21 = vld [vmem:[%s2] sm:$0x1]
    %v23 = vlaneseq
    %v24 = vshrl.u32 %v23, 7
    %v25 = vsub.s32 0, %v24
    %v26 = vrot.slane %v21, %v25
    %v32 = vunpack.c.l.b16 %v17
    %v33 = vunpack.c.l.b16 %v18
    %v34 = vunpack.c.l.b16 %v19
    %v35 = vunpack.c.l.b16 %v20
    %v36 = vpack.c.b16 %v33, %v32
    %v37 = vpack.c.b16 %v35, %v34
    %vm40 = vcmask 261120
    %v42 = vsel %vm40, %v16, 0
    %44 = vmatprep.subr.bf16.mxu0 0
    %45 = vmatpush1.bf16.msra.mxu0 %v36
    %46 = vmatprep.subr.bf16.mxu0 0
    %47 = vmatpush1.bf16.msra.mxu0 %v37
    %48 = vmatprep.subr.bf16.mxu0 0
    %49 = vmatpush1.bf16.msra.mxu0 0
    %50 = vmatprep.subr.bf16.mxu0 0
    %51 = vmatpush1.bf16.msra.mxu0 0
    %52 = vmatprep.subr.bf16.mxu0 0
    %53 = vmatpush1.bf16.msra.mxu0 0
    %54 = vmatprep.subr.bf16.mxu0 0
    %55 = vmatpush1.bf16.msra.mxu0 0
    %56 = vmatprep.subr.bf16.mxu0 0
    %57 = vmatpush1.bf16.msra.mxu0 0
    %58 = vmatprep.subr.bf16.mxu0 0
    %59 = vmatpush1.bf16.msra.mxu0 0
    %60 = vmatprep.subr.bf16.mxu0 0
    %61 = vmatpush1.bf16.msra.mxu0 0
    %62 = vmatprep.subr.bf16.mxu0 0
    %63 = vmatpush1.bf16.msra.mxu0 0
    %64 = vmatprep.subr.bf16.mxu0 0
    %65 = vmatpush1.bf16.msra.mxu0 0
    %66 = vmatprep.subr.bf16.mxu0 0
    %67 = vmatpush1.bf16.msra.mxu0 0
    %68 = vmatprep.subr.bf16.mxu0 0
    %69 = vmatpush1.bf16.msra.mxu0 0
    %70 = vmatprep.subr.bf16.mxu0 0
    %71 = vmatpush1.bf16.msra.mxu0 0
    %72 = vmatprep.subr.bf16.mxu0 0
    %73 = vmatpush1.bf16.msra.mxu0 0
    %74 = vmatprep.subr.bf16.mxu0 0
    %75 = vmatpush1.bf16.msra.mxu0 0
    %76 = vmatprep.mubr.bf16.mxu0 0
    %77 = vmatmul.mubr.bf16.gmra.mrb[0].mxu0 %v42
    %v78 = vpop.f32.mrb[0].mxu0
    %v79 = vadd.f32 %v26, %v78
    %v80 = vpop.f32.mrb[0].mxu0
    %v81 = vpop.f32.mrb[0].mxu0
    %v82 = vpop.f32.mrb[0].mxu0
    %83 = vdwg.mxu0
    %v84 = vtanh.pop %v79
    %85 = vst.msk [vmem:[#allocation2] sm:$0xff] %vm40, %v84
    // Predicated region
    $region14: #{fwd.1} parent=1 // pred_check
      _
    $region15: #{fwd.1} parent=1 // pred_check_branch
      %87 = sbr.rel (0) target = $region17
    $region16: #{fwd.1} parent=1 // pred_region
      %s89 = ssub.s32 128, 128
      %90 = vsyncadd [#allocation3], %s89
      %s92 = sshll.u32 [#allocation2], 4
      %s93 = int_to_ptr.vmem [resolvable:$true] %s92
      %95 = dma.vmem_to_hbm [thread:$0]  %s93, 128, %s3, [#allocation3]
    $region17: #{fwd.1} parent=1 // pred_fallthru
      _
    // Predicated region
    $region18: #{fwd.1} parent=1 // pred_check
      _
    $region19: #{fwd.1} parent=1 // pred_check_branch
      %97 = sbr.rel (0) target = $region21
    $region20: #{fwd.1} parent=1 // pred_region
      %98 = dma.done [#allocation3], 128
    $region21: #{fwd.1} parent=1 // pred_fallthru
      _
    %99 = vsyncpa [#allocation3], 1

</llo_original>
